<compile_context>
chip_gen: v7x
topology: tpu7x:2x2x1
jax: 0.10.0
libtpu: 0.0.40
codegen_flags: <defaults>
</compile_context>

<pallas_src>
import numpy as np
import jax
import jax.numpy as jnp
from jax.experimental import pallas as pl
from jax.experimental.pallas import tpu as pltpu

# ----------------------------- config (small demo shapes) --------------------
B         = 2
VM_INPUT  = 24
VM_SIZES  = (32, 16)      # VM_encoder_sizes  -> VM_hidden_size  = 16
SOI_INPUT = 12
SOI_SIZES = (16, 16)      # SoI_encoder_sizes -> SoI_hidden_size = 16
FC_SIZES  = (32, 16)      # args.fc_sizes
OUT       = 8             # args.output_size

D_PAD     = 128           # lane-dense padded feature width (all dims <= 127)
ONES_LANE = D_PAD - 1     # homogeneous-coordinate lane used for bias folding
N_LAYERS  = 5             # 2 (fused encoders) + 3 (FC chain)


def _round_up(x, m):
    return (x + m - 1) // m * m


# ----------------------------- Pallas kernel ---------------------------------
def dae_mlp_kernel(x_ref, w_ref, o_ref):
    """x_ref: (bm, 128) bf16 input tile (features + ones lane, zero padded).
    w_ref:  (5, 128, 128) bf16 stacked padded weights (bias folded, lane 127).
    o_ref:  (bm, 128) bf16 lane-dense output tile."""
    h = x_ref[...]                               # already bf16 -> MXU operand
    for l in range(N_LAYERS):                    # static unroll; w_ref[l] is free
        act = jnp.dot(h, w_ref[l], preferred_element_type=jnp.float32)
        h = jnp.maximum(act, 0.0).astype(jnp.bfloat16)   # f32 acc+ReLU, bf16 out
    o_ref[...] = h                               # lane-dense bf16 store


def dae_mlp_forward(x_pad, w_stack, *, bm):
    b_pad, d = x_pad.shape
    n_layers = w_stack.shape[0]
    grid = (b_pad // bm,)
    return pl.pallas_call(
        dae_mlp_kernel,
        out_shape=jax.ShapeDtypeStruct((b_pad, d), jnp.bfloat16),
        grid_spec=pltpu.PrefetchScalarGridSpec(
            num_scalar_prefetch=0,
            grid=grid,
            in_specs=[
                pl.BlockSpec((bm, d), lambda i: (i, 0)),
                # Constant block index -> the stacked weights are DMA'd once
                # and stay VMEM-resident across all grid steps (one descriptor
                # instead of five).  pl.Buffered(1) would also drop the unused
                # second buffer (~160 KiB), but the default pipeline mode is
                # kept for lowering portability; the VMEM delta is negligible.
                pl.BlockSpec((n_layers, d, d), lambda i: (0, 0, 0)),
            ],
            out_specs=pl.BlockSpec((bm, d), lambda i: (i, 0)),
        ),
        compiler_params=pltpu.CompilerParams(
            dimension_semantics=("parallel",)),   # shards batch on v7x's 2 TCs
    )(x_pad, w_stack)


def choose_tiling(batch, max_bm=1024):
    """Batch tile: multiple of 16 (bf16 sublane packing), no 256 cap — the
    kernel is HBM-bound so big tiles amortize the ~0.35us per-grid-step
    overhead.  Also guarantee >= 2 grid steps so the "parallel" axis can
    actually use both TensorCores on v7x."""
    bm = min(max_bm, _round_up(batch, 16))
    while bm > 16 and pl.cdiv(batch, bm) < 2:
        bm = max(16, _round_up(bm // 2, 16))
    b_pad = max(_round_up(batch, bm), 2 * bm)
    return bm, b_pad


# ----------------------------- parameter prep (glue) -------------------------
def pad_layer(w_in_out, bias):
    """Pack a (din, dout) input-major weight + (dout,) bias into a (128, 128)
    f32 matrix; bias lives in the ones lane so the kernel needs no bias add."""
    din, dout = w_in_out.shape
    wp = np.zeros((D_PAD, D_PAD), np.float32)
    wp[:din, :dout] = w_in_out
    wp[ONES_LANE, :dout] = bias
    wp[ONES_LANE, ONES_LANE] = 1.0        # keeps the ones lane alive through ReLU
    return wp


def block_diag(a, b):
    ra, ca = a.shape
    rb, cb = b.shape
    out = np.zeros((ra + rb, ca + cb), np.float32)
    out[:ra, :ca] = a
    out[ra:, ca:] = b
    return out


def init_linear(key, out_f, in_f, w_scale=0.3, b_scale=0.1):
    kw, kb = jax.random.split(key)
    W = jax.random.normal(kw, (out_f, in_f), jnp.float32) * w_scale
    b = jax.random.normal(kb, (out_f,), jnp.float32) * b_scale
    return W, b


# ----------------------------- reference (plain JAX) -------------------------
def reference(VM, SoI, vm_layers, soi_layers, fc_layers):
    def mlp(x, layers):
        for W, b in layers:
            x = jax.nn.relu(x @ W.T + b)
        return x
    vm_f = mlp(VM, vm_layers)
    soi_f = mlp(SoI, soi_layers)
    x = jnp.concatenate([vm_f, soi_f], axis=1)
    return mlp(x, fc_layers)     # last FC layer also has ReLU, as in the module


# ----------------------------- main -------------------------------------------
if __name__ == "__main__":
    key = jax.random.PRNGKey(0)
    keys = jax.random.split(key, 9)

    # TODO(synk): load_encoder_state_dict() loads pretrained weights from disk;
    # parameters are synthesized deterministically in-script instead.
    W_vm1, b_vm1 = init_linear(keys[0], VM_SIZES[0], VM_INPUT)
    W_vm2, b_vm2 = init_linear(keys[1], VM_SIZES[1], VM_SIZES[0])
    W_s1,  b_s1  = init_linear(keys[2], SOI_SIZES[0], SOI_INPUT)
    W_s2,  b_s2  = init_linear(keys[3], SOI_SIZES[1], SOI_SIZES[0])
    fc_in = VM_SIZES[-1] + SOI_SIZES[-1]
    W_f1,  b_f1  = init_linear(keys[4], FC_SIZES[0], fc_in)
    W_f2,  b_f2  = init_linear(keys[5], FC_SIZES[1], FC_SIZES[0])
    W_f3,  b_f3  = init_linear(keys[6], OUT, FC_SIZES[-1])

    VM  = jax.random.normal(keys[7], (B, VM_INPUT), jnp.float32)
    SoI = jax.random.normal(keys[8], (B, SOI_INPUT), jnp.float32)

    # Fuse the two encoders into block-diagonal layers (concat becomes a no-op).
    L1_w = block_diag(np.asarray(W_vm1).T, np.asarray(W_s1).T)        # (36, 48)
    L1_b = np.concatenate([np.asarray(b_vm1), np.asarray(b_s1)])
    L2_w = block_diag(np.asarray(W_vm2).T, np.asarray(W_s2).T)        # (48, 32)
    L2_b = np.concatenate([np.asarray(b_vm2), np.asarray(b_s2)])
    L3_w, L3_b = np.asarray(W_f1).T, np.asarray(b_f1)                 # (32, 32)
    L4_w, L4_b = np.asarray(W_f2).T, np.asarray(b_f2)                 # (32, 16)
    L5_w, L5_b = np.asarray(W_f3).T, np.asarray(b_f3)                 # (16, 8)

    # Single stacked (5, 128, 128) bf16 weight tensor (one DMA descriptor).
    w_stack = jnp.asarray(
        np.stack([pad_layer(w, b) for w, b in
                  [(L1_w, L1_b), (L2_w, L2_b), (L3_w, L3_b),
                   (L4_w, L4_b), (L5_w, L5_b)]]),
        dtype=jnp.bfloat16)

    # Lane-dense bf16 (B_pad, 128) input tile: [VM | SoI | zeros | ones lane].
    bm, B_pad = choose_tiling(B)
    x_np = np.zeros((B_pad, D_PAD), np.float32)
    x_np[:B, :VM_INPUT] = np.asarray(VM)
    x_np[:B, VM_INPUT:VM_INPUT + SOI_INPUT] = np.asarray(SoI)
    x_np[:, ONES_LANE] = 1.0
    x_pad = jnp.asarray(x_np, dtype=jnp.bfloat16)

    out_pad = dae_mlp_forward(x_pad, w_stack, bm=bm)
    out_pad = jax.block_until_ready(out_pad)
    out = np.asarray(out_pad.astype(jnp.float32))[:B, :OUT]   # slice live rows/lanes

    ref = reference(
        VM, SoI,
        [(W_vm1, b_vm1), (W_vm2, b_vm2)],
        [(W_s1, b_s1), (W_s2, b_s2)],
        [(W_f1, b_f1), (W_f2, b_f2), (W_f3, b_f3)],
    )
    np.testing.assert_allclose(out, np.asarray(ref), rtol=5e-2, atol=5e-2)

    print("KERNEL_OK")
</pallas_src>

<mosaic_0001>
module attributes {stable_mosaic.version = 11 : i64} {
  func.func @dae_mlp_kernel(%arg0: i32, %arg1: memref<16x128xbf16, #tpu.memory_space<vmem>>, %arg2: memref<5x128x128xbf16, #tpu.memory_space<vmem>>, %arg3: memref<16x128xbf16, #tpu.memory_space<vmem>>) attributes {dimension_semantics = [#tpu.dimension_semantics<parallel>], iteration_bounds = array<i64: 2>, scalar_prefetch = 0 : i64, scratch_operands = 0 : i64, tpu.core_type = #tpu.core_type<tc>, window_params = [{transform_indices = @transform_0, window_bounds = array<i64: 16, 128>}, {pipeline_mode = #tpu.pipeline_mode<synchronous>, transform_indices = @transform_1, window_bounds = array<i64: 5, 128, 128>}, {transform_indices = @transform_2, window_bounds = array<i64: 16, 128>}]} {
    %c0 = arith.constant 0 : index
    %c0_0 = arith.constant 0 : index
    %0 = vector.load %arg1[%c0, %c0_0] : memref<16x128xbf16, #tpu.memory_space<vmem>>, vector<16x128xbf16>
    %c0_1 = arith.constant 0 : index
    %c0_2 = arith.constant 0 : index
    %c0_3 = arith.constant 0 : index
    %1 = vector.load %arg2[%c0_1, %c0_2, %c0_3] : memref<5x128x128xbf16, #tpu.memory_space<vmem>>, vector<1x128x128xbf16>
    %2 = vector.shape_cast %1 : vector<1x128x128xbf16> to vector<128x128xbf16>
    %cst = arith.constant dense<0.000000e+00> : vector<16x128xf32>
    %3 = tpu.matmul %0, %2, %cst {dimension_numbers = #tpu.dot_dimension_numbers<[1], [0], [0], [1], [0, 0, 1, 1], [], []>} : vector<16x128xbf16>, vector<128x128xbf16>, vector<16x128xf32> -> vector<16x128xf32>
    %cst_4 = arith.constant 0.000000e+00 : f32
    %4 = vector.broadcast %cst_4 : f32 to vector<16x128xf32>
    %5 = arith.maximumf %3, %4 : vector<16x128xf32>
    %6 = arith.truncf %5 : vector<16x128xf32> to vector<16x128xbf16>
    %c1 = arith.constant 1 : index
    %c0_5 = arith.constant 0 : index
    %c0_6 = arith.constant 0 : index
    %7 = vector.load %arg2[%c1, %c0_5, %c0_6] : memref<5x128x128xbf16, #tpu.memory_space<vmem>>, vector<1x128x128xbf16>
    %8 = vector.shape_cast %7 : vector<1x128x128xbf16> to vector<128x128xbf16>
    %cst_7 = arith.constant dense<0.000000e+00> : vector<16x128xf32>
    %9 = tpu.matmul %6, %8, %cst_7 {dimension_numbers = #tpu.dot_dimension_numbers<[1], [0], [0], [1], [0, 0, 1, 1], [], []>} : vector<16x128xbf16>, vector<128x128xbf16>, vector<16x128xf32> -> vector<16x128xf32>
    %cst_8 = arith.constant 0.000000e+00 : f32
    %10 = vector.broadcast %cst_8 : f32 to vector<16x128xf32>
    %11 = arith.maximumf %9, %10 : vector<16x128xf32>
    %12 = arith.truncf %11 : vector<16x128xf32> to vector<16x128xbf16>
    %c2 = arith.constant 2 : index
    %c0_9 = arith.constant 0 : index
    %c0_10 = arith.constant 0 : index
    %13 = vector.load %arg2[%c2, %c0_9, %c0_10] : memref<5x128x128xbf16, #tpu.memory_space<vmem>>, vector<1x128x128xbf16>
    %14 = vector.shape_cast %13 : vector<1x128x128xbf16> to vector<128x128xbf16>
    %cst_11 = arith.constant dense<0.000000e+00> : vector<16x128xf32>
    %15 = tpu.matmul %12, %14, %cst_11 {dimension_numbers = #tpu.dot_dimension_numbers<[1], [0], [0], [1], [0, 0, 1, 1], [], []>} : vector<16x128xbf16>, vector<128x128xbf16>, vector<16x128xf32> -> vector<16x128xf32>
    %cst_12 = arith.constant 0.000000e+00 : f32
    %16 = vector.broadcast %cst_12 : f32 to vector<16x128xf32>
    %17 = arith.maximumf %15, %16 : vector<16x128xf32>
    %18 = arith.truncf %17 : vector<16x128xf32> to vector<16x128xbf16>
    %c3 = arith.constant 3 : index
    %c0_13 = arith.constant 0 : index
    %c0_14 = arith.constant 0 : index
    %19 = vector.load %arg2[%c3, %c0_13, %c0_14] : memref<5x128x128xbf16, #tpu.memory_space<vmem>>, vector<1x128x128xbf16>
    %20 = vector.shape_cast %19 : vector<1x128x128xbf16> to vector<128x128xbf16>
    %cst_15 = arith.constant dense<0.000000e+00> : vector<16x128xf32>
    %21 = tpu.matmul %18, %20, %cst_15 {dimension_numbers = #tpu.dot_dimension_numbers<[1], [0], [0], [1], [0, 0, 1, 1], [], []>} : vector<16x128xbf16>, vector<128x128xbf16>, vector<16x128xf32> -> vector<16x128xf32>
    %cst_16 = arith.constant 0.000000e+00 : f32
    %22 = vector.broadcast %cst_16 : f32 to vector<16x128xf32>
    %23 = arith.maximumf %21, %22 : vector<16x128xf32>
    %24 = arith.truncf %23 : vector<16x128xf32> to vector<16x128xbf16>
    %c4 = arith.constant 4 : index
    %c0_17 = arith.constant 0 : index
    %c0_18 = arith.constant 0 : index
    %25 = vector.load %arg2[%c4, %c0_17, %c0_18] : memref<5x128x128xbf16, #tpu.memory_space<vmem>>, vector<1x128x128xbf16>
    %26 = vector.shape_cast %25 : vector<1x128x128xbf16> to vector<128x128xbf16>
    %cst_19 = arith.constant dense<0.000000e+00> : vector<16x128xf32>
    %27 = tpu.matmul %24, %26, %cst_19 {dimension_numbers = #tpu.dot_dimension_numbers<[1], [0], [0], [1], [0, 0, 1, 1], [], []>} : vector<16x128xbf16>, vector<128x128xbf16>, vector<16x128xf32> -> vector<16x128xf32>
    %cst_20 = arith.constant 0.000000e+00 : f32
    %28 = vector.broadcast %cst_20 : f32 to vector<16x128xf32>
    %29 = arith.maximumf %27, %28 : vector<16x128xf32>
    %30 = arith.truncf %29 : vector<16x128xf32> to vector<16x128xbf16>
    %c0_21 = arith.constant 0 : index
    %c0_22 = arith.constant 0 : index
    %31 = vector.load %arg3[%c0_21, %c0_22] : memref<16x128xbf16, #tpu.memory_space<vmem>>, vector<16x128xbf16>
    tpu.vector_store %arg3[%c0_21, %c0_22], %30 {strides = array<i32>} : memref<16x128xbf16, #tpu.memory_space<vmem>>, vector<16x128xbf16>,
    return
  }
  func.func @transform_0(%arg0: i32) -> (i32, i32) {
    %c0_i32 = arith.constant 0 : i32
    %c0_i32_0 = arith.constant 0 : i32
    return %arg0, %c0_i32 : i32, i32
  }
  func.func @transform_1(%arg0: i32) -> (i32, i32, i32) {
    %c0_i32 = arith.constant 0 : i32
    %c0_i32_0 = arith.constant 0 : i32
    %c0_i32_1 = arith.constant 0 : i32
    %c0_i32_2 = arith.constant 0 : i32
    return %c0_i32, %c0_i32_0, %c0_i32_1 : i32, i32, i32
  }
  func.func @transform_2(%arg0: i32) -> (i32, i32) {
    %c0_i32 = arith.constant 0 : i32
    %c0_i32_0 = arith.constant 0 : i32
    return %arg0, %c0_i32 : i32, i32
  }
}

</mosaic_0001>

<llo_original>
// kernel: tpu_custom_call.1
$region0: #{tpu_custom_call.1}
  #allocation0 [shape = 'u32[]', space=smem, size = 0x4, offset = 0x4, fixed_abs, tag = 'smem constant byte address 0x4 - core index']
  #allocation1 [shape = 'u32[144,128]{1,0:T(1,128)}', space=vmem, size = 0x12000, scoped, tag = 'internal scratch']
  %s0 = inlined_call_operand.hbm [shape: bf16[32,128], index: 0, kind: input, shape index: {}]
  %s1 = inlined_call_operand.hbm [shape: bf16[5,128,128], index: 1, kind: input, shape index: {}]
  %s2 = inlined_call_operand.hbm [shape: bf16[32,128], index: 2, kind: output, shape index: {}]
  %s3 = sld [smem:[#allocation0]]
  $region49: #{tpu_custom_call.1} parent=0
    _
  %s5 = ssub.s32 1, %s3
  %s6 = scalar_select 0, %s5, %s3
  $region1: #{tpu_custom_call.1} parent=0
    #allocation2 [shape = 'u8[8192]{0}', space=vmem, size = 0x2000, scoped, tag = 'input window, operand 0']
    #allocation3 [shape = 's32[2]{0}', space=sflag, size = 0x8, scoped, tag = 'scoped memory for tpu_custom_call.1']
    #allocation4 [shape = 's32[2]{0}', space=sflag, size = 0x8, scoped, tag = 'scoped memory for tpu_custom_call.1']
    #allocation5 [shape = 'u8[163840]{0}', space=vmem, size = 0x28000, scoped, tag = 'input window, operand 1, single buffered']
    #allocation6 [shape = 's32[1]{0}', space=sflag, size = 0x4, scoped, tag = 'scoped memory for tpu_custom_call.1']
    #allocation7 [shape = 'u8[8192]{0}', space=vmem, size = 0x2000, scoped, tag = 'output window, operand 0']
    %7 = vsyncpa [#allocation3], 0
    %s8 = scalar_lea.sflag [#allocation3], 1
    %9 = vsyncpa %s8, 0
    %10 = vsyncpa [#allocation6], 0
    %11 = vsyncpa [#allocation4], 0
    %s12 = scalar_lea.sflag [#allocation4], 1
    %13 = vsyncpa %s12, 0
    loop: start=0, step=1, limit=4
    $region2: #{tpu_custom_call.1} parent=1 // loop_pre_header
      _
    $region3: #{tpu_custom_call.1} parent=1 // loop_header
      %s15 = sphi 0, %s19
      %p16 = scmp.ge.s32.totalorder %s15, 4
      %s25 = sphi 0, %s27
      %s28 = sphi 0, %s25
      %s29 = sphi 0, %s28
      %s45 = sphi 0, %s29
      %s49 = sphi 0, %s49
      %s51 = sphi 0, %s49
      %s52 = sphi 0, %s51
      %s66 = sphi 0, %s52
      %s72 = sphi 0, %s74
      %s75 = sphi 0, %s72
      %s76 = sphi 0, %s75
      %s92 = sphi 0, %s76
    $region4: #{tpu_custom_call.1} parent=1 // loop_header_branch
      %18 = sbr.rel (%p16) target = $region8
    $region5: #{tpu_custom_call.1} parent=1 // loop_body
      %s20 = ssub.s32 %s15, 1
      %s21 = ssub.s32 %s15, 2
      %s22 = sadd.s32 %s15, 1
      %s23 = ssub.s32 %s15, %s22
      %p24 = scmp.eq.s32.totalorder %s23, 0
      %s26 = sadd.s32 %s25, 1
      %s27 = scalar_select %p24, %s25, %s26
      %p30 = pneg %p24
      %p31 = scmp.eq.s32.totalorder %s15, 1
      %p32 = por %p30, %p31
      %p33 = scmp.ne.s32.totalorder %s25, %s28
      %p34 = scmp.eq.s32.totalorder %s15, 0
      %p35 = por %p33, %p34
      %p36 = scmp.ne.s32.totalorder %s25, %s28
      %p37 = scmp.eq.s32.totalorder %s20, 1
      %p38 = por %p36, %p37
      %p39 = scmp.ne.s32.totalorder %s28, %s29
      %p40 = scmp.eq.s32.totalorder %s20, 0
      %p41 = por %p39, %p40
      %p42 = scmp.ne.s32.totalorder %s28, %s29
      %p43 = scmp.eq.s32.totalorder %s21, 1
      %p44 = por %p42, %p43
      %p46 = scmp.ne.s32.totalorder %s29, %s45
      %p47 = scmp.eq.s32.totalorder %s21, 0
      %p48 = por %p46, %p47
      %s50 = sadd.s32 %s49, 1
      %p53 = scmp.eq.s32.totalorder %s15, 1
      %p54 = scmp.ne.s32.totalorder %s49, %s51
      %p55 = scmp.eq.s32.totalorder %s15, 0
      %p56 = por %p54, %p55
      %p57 = scmp.ne.s32.totalorder %s49, %s51
      %p58 = scmp.eq.s32.totalorder %s20, 1
      %p59 = por %p57, %p58
      %p60 = scmp.ne.s32.totalorder %s51, %s52
      %p61 = scmp.eq.s32.totalorder %s20, 0
      %p62 = por %p60, %p61
      %p63 = scmp.ne.s32.totalorder %s51, %s52
      %p64 = scmp.eq.s32.totalorder %s21, 1
      %p65 = por %p63, %p64
      %p67 = scmp.ne.s32.totalorder %s52, %s66
      %p68 = scmp.eq.s32.totalorder %s21, 0
      %p69 = por %p67, %p68
      %s70 = ssub.s32 %s15, %s22
      %p71 = scmp.eq.s32.totalorder %s70, 0
      %s73 = sadd.s32 %s72, 1
      %s74 = scalar_select %p71, %s72, %s73
      %p77 = pneg %p71
      %p78 = scmp.eq.s32.totalorder %s15, 1
      %p79 = por %p77, %p78
      %p80 = scmp.ne.s32.totalorder %s72, %s75
      %p81 = scmp.eq.s32.totalorder %s15, 0
      %p82 = por %p80, %p81
      %p83 = scmp.ne.s32.totalorder %s72, %s75
      %p84 = scmp.eq.s32.totalorder %s20, 1
      %p85 = por %p83, %p84
      %p86 = scmp.ne.s32.totalorder %s75, %s76
      %p87 = scmp.eq.s32.totalorder %s20, 0
      %p88 = por %p86, %p87
      %p89 = scmp.ne.s32.totalorder %s75, %s76
      %p90 = scmp.eq.s32.totalorder %s21, 1
      %p91 = por %p89, %p90
      %p93 = scmp.ne.s32.totalorder %s76, %s92
      %p94 = scmp.eq.s32.totalorder %s21, 0
      %p95 = por %p93, %p94
      %p96 = scmp.le.s32.totalorder 1, %s15
      %p97 = scmp.lt.s32.totalorder %s15, 3
      %p98 = pnand %p96, %p97
      %p99 = pneg %p98
      // Predicated region
      $region9: #{tpu_custom_call.1} parent=5 // pred_check
        _
      $region10: #{tpu_custom_call.1} parent=5 // pred_check_branch
        %101 = sbr.rel (%p98) target = $region12
      $region11: #{tpu_custom_call.1} parent=5 // pred_region
        %s102 = ssub.s32 %s15, 1
        // Predicated region
        $region13: #{tpu_custom_call.1} parent=11 // pred_check
          %p103 = pneg %p62
        $region14: #{tpu_custom_call.1} parent=11 // pred_check_branch
          %105 = sbr.rel (%p103) target = $region16
        $region15: #{tpu_custom_call.1} parent=11 // pred_region
          %s107 = ssub.s32 5120, 5120
          %108 = vsyncadd [#allocation6], %s107
          %s109 = sshll.u32 [#allocation5], 4
          %s110 = int_to_ptr.vmem [resolvable:$true] %s109
          %115 = dma.hbm_to_vmem [thread:$0]  %s1, 5120, %s110, [#allocation6], 64, 64, 4
        $region16: #{tpu_custom_call.1} parent=11 // pred_fallthru
          _
      $region12: #{tpu_custom_call.1} parent=5 // pred_fallthru
        _
      %p116 = scmp.lt.s32.totalorder %s15, 2
      // Predicated region
      $region17: #{tpu_custom_call.1} parent=5 // pred_check
        %p117 = pneg %p116
      $region18: #{tpu_custom_call.1} parent=5 // pred_check_branch
        %119 = sbr.rel (%p117) target = $region20
      $region19: #{tpu_custom_call.1} parent=5 // pred_region
        // Predicated region
        $region21: #{tpu_custom_call.1} parent=19 // pred_check
          %p120 = pneg %p35
        $region22: #{tpu_custom_call.1} parent=19 // pred_check_branch
          %122 = sbr.rel (%p120) target = $region24
        $region23: #{tpu_custom_call.1} parent=19 // pred_region
          %s123 = sand.u32 %s25, 1
          %s124 = scalar_lea.sflag [#allocation3], %s123
          %s125 = sand.u32 %s25, 1
          %s126 = smul.addr %s125, 8
          %s127 = scalar_lea.vmem [#allocation2], %s126
          %s128 = smul.u32 2, %s15
          %s130 = ssub.s32 128, 128
          %131 = vsyncadd %s124, %s130
          %s132 = smul.addr %s128, 64
          %s133 = scalar_lea.hbm %s0, %s132
          %s134 = sshll.u32 %s127, 4
          %s135 = int_to_ptr.vmem [resolvable:$true] %s134
          %140 = dma.hbm_to_vmem [thread:$0]  %s133, 128, %s135, %s124, 64, 64, 4
        $region24: #{tpu_custom_call.1} parent=19 // pred_fallthru
          _
      $region20: #{tpu_custom_call.1} parent=5 // pred_fallthru
        _
      %p141 = scmp.le.s32.totalorder 1, %s15
      %p142 = scmp.lt.s32.totalorder %s15, 3
      %p143 = pnand %p141, %p142
      %p144 = pneg %p143
      // Predicated region
      $region25: #{tpu_custom_call.1} parent=5 // pred_check
        _
      $region26: #{tpu_custom_call.1} parent=5 // pred_check_branch
        %146 = sbr.rel (%p143) target = $region28
      $region27: #{tpu_custom_call.1} parent=5 // pred_region
        %s147 = ssub.s32 %s15, 1
        %s148 = sand.u32 %s28, 1
        %s149 = scalar_lea.sflag [#allocation3], %s148
        %s150 = sand.u32 %s28, 1
        %s151 = smul.addr %s150, 8
        %s152 = scalar_lea.vmem [#allocation2], %s151
        // Predicated region
        $region29: #{tpu_custom_call.1} parent=27 // pred_check
          %p153 = pneg %p41
        $region30: #{tpu_custom_call.1} parent=27 // pred_check_branch
          %155 = sbr.rel (%p153) target = $region32
        $region31: #{tpu_custom_call.1} parent=27 // pred_region
          %156 = dma.done %s149, 128
        $region32: #{tpu_custom_call.1} parent=27 // pred_fallthru
          _
        // Predicated region
        $region33: #{tpu_custom_call.1} parent=27 // pred_check
          %p157 = pneg %p62
        $region34: #{tpu_custom_call.1} parent=27 // pred_check_branch
          %159 = sbr.rel (%p157) target = $region36
        $region35: #{tpu_custom_call.1} parent=27 // pred_region
          %160 = dma.done [#allocation6], 5120
        $region36: #{tpu_custom_call.1} parent=27 // pred_fallthru
          _
        %s161 = sand.u32 %s28, 1
        %s162 = scalar_lea.sflag [#allocation3], %s161
        %s163 = sand.u32 %s28, 1
        %s164 = smul.addr %s163, 8
        %s165 = scalar_lea.vmem [#allocation2], %s164
        %p166 = pneg %p41
        %p167 = pneg %p38
        %p168 = pneg %p62
        %p169 = pneg %p59
        %p170 = pneg %p88
        %p171 = pneg %p85
        %s172 = sand.u32 %s75, 1
        %s173 = scalar_lea.sflag [#allocation4], %s172
        %s174 = sand.u32 %s75, 1
        %s175 = smul.addr %s174, 8
        %s176 = scalar_lea.vmem [#allocation7], %s175
        %s177 = smul.u32 2, %s20
        %s178 = smul.u32 2, %s20
        %v180 = vld [vmem:[%s152] sm:$0xf]
        %v181 = vld [vmem:[%s152 + $0x4] sm:$0xf]
        %v182 = vld [vmem:[#allocation5] sm:$0xf]
        %v183 = vld [vmem:[#allocation5 + $0x4] sm:$0xf]
        %v184 = vld [vmem:[#allocation5 + $0x8] sm:$0xf]
        %v185 = vld [vmem:[#allocation5 + $0xc] sm:$0xf]
        %v186 = vld [vmem:[#allocation5 + $0x10] sm:$0xf]
        %v187 = vld [vmem:[#allocation5 + $0x14] sm:$0xf]
        %v188 = vld [vmem:[#allocation5 + $0x18] sm:$0xf]
        %v189 = vld [vmem:[#allocation5 + $0x1c] sm:$0xf]
        %v190 = vld [vmem:[#allocation5 + $0x20] sm:$0xf]
        %v191 = vld [vmem:[#allocation5 + $0x24] sm:$0xf]
        %v192 = vld [vmem:[#allocation5 + $0x28] sm:$0xf]
        %v193 = vld [vmem:[#allocation5 + $0x2c] sm:$0xf]
        %v194 = vld [vmem:[#allocation5 + $0x30] sm:$0xf]
        %v195 = vld [vmem:[#allocation5 + $0x34] sm:$0xf]
        %v196 = vld [vmem:[#allocation5 + $0x38] sm:$0xf]
        %v197 = vld [vmem:[#allocation5 + $0x3c] sm:$0xf]
        %v200 = vunpack.c.l.b16 %v180
        %v201 = vunpack.c.l.b16 %v181
        %v202 = vpack.c.b16 %v201, %v200
        %v220 = vunpack.c.l.b16 %v182
        %v221 = vunpack.c.l.b16 %v183
        %v222 = vunpack.c.l.b16 %v184
        %v223 = vunpack.c.l.b16 %v185
        %v224 = vunpack.c.l.b16 %v186
        %v225 = vunpack.c.l.b16 %v187
        %v226 = vunpack.c.l.b16 %v188
        %v227 = vunpack.c.l.b16 %v189
        %v228 = vunpack.c.l.b16 %v190
        %v229 = vunpack.c.l.b16 %v191
        %v230 = vunpack.c.l.b16 %v192
        %v231 = vunpack.c.l.b16 %v193
        %v232 = vunpack.c.l.b16 %v194
        %v233 = vunpack.c.l.b16 %v195
        %v234 = vunpack.c.l.b16 %v196
        %v235 = vunpack.c.l.b16 %v197
        %v236 = vpack.c.b16 %v221, %v220
        %v237 = vpack.c.b16 %v223, %v222
        %v238 = vpack.c.b16 %v225, %v224
        %v239 = vpack.c.b16 %v227, %v226
        %v240 = vpack.c.b16 %v229, %v228
        %v241 = vpack.c.b16 %v231, %v230
        %v242 = vpack.c.b16 %v233, %v232
        %v243 = vpack.c.b16 %v235, %v234
        %252 = vmatprep.subr.bf16.mxu0 0
        %253 = vmatpush1.bf16.msra.mxu0 %v236
        %254 = vmatprep.subr.bf16.mxu0 0
        %255 = vmatpush1.bf16.msra.mxu0 %v237
        %256 = vmatprep.subr.bf16.mxu0 0
        %257 = vmatpush1.bf16.msra.mxu0 %v238
        %258 = vmatprep.subr.bf16.mxu0 0
        %259 = vmatpush1.bf16.msra.mxu0 %v239
        %260 = vmatprep.subr.bf16.mxu0 0
        %261 = vmatpush1.bf16.msra.mxu0 %v240
        %262 = vmatprep.subr.bf16.mxu0 0
        %263 = vmatpush1.bf16.msra.mxu0 %v241
        %264 = vmatprep.subr.bf16.mxu0 0
        %265 = vmatpush1.bf16.msra.mxu0 %v242
        %266 = vmatprep.subr.bf16.mxu0 0
        %267 = vmatpush1.bf16.msra.mxu0 %v243
        %268 = vmatprep.subr.bf16.mxu0 0
        %269 = vmatpush1.bf16.msra.mxu0 0
        %270 = vmatprep.subr.bf16.mxu0 0
        %271 = vmatpush1.bf16.msra.mxu0 0
        %272 = vmatprep.subr.bf16.mxu0 0
        %273 = vmatpush1.bf16.msra.mxu0 0
        %274 = vmatprep.subr.bf16.mxu0 0
        %275 = vmatpush1.bf16.msra.mxu0 0
        %276 = vmatprep.subr.bf16.mxu0 0
        %277 = vmatpush1.bf16.msra.mxu0 0
        %278 = vmatprep.subr.bf16.mxu0 0
        %279 = vmatpush1.bf16.msra.mxu0 0
        %280 = vmatprep.subr.bf16.mxu0 0
        %281 = vmatpush1.bf16.msra.mxu0 0
        %282 = vmatprep.subr.bf16.mxu0 0
        %283 = vmatpush1.bf16.msra.mxu0 0
        %284 = vmatprep.mubr.bf16.mxu0 0
        %285 = vmatmul.mubr.bf16.gmra.mrb[0].mxu0 %v202
        %v286 = vpop.f32.mrb[0].mxu0
        %v287 = vadd.f32 0.0, %v286
        %v288 = vpop.f32.mrb[0].mxu0
        %v289 = vpop.f32.mrb[0].mxu0
        %v290 = vadd.f32 0.0, %v289
        %v291 = vpop.f32.mrb[0].mxu0
        %292 = vdwg.mxu0
        %v293 = vmax.f32 %v287, 0.0
        %v294 = vmax.f32 %v290, 0.0
        %v295 = vpack.c.bf16 %v294, %v293
        %s296 = scalar_lea.vmem [#allocation5], 64
        %v297 = vld [vmem:[%s296] sm:$0xf]
        %v298 = vld [vmem:[%s296 + $0x4] sm:$0xf]
        %v299 = vld [vmem:[%s296 + $0x8] sm:$0xf]
        %v300 = vld [vmem:[%s296 + $0xc] sm:$0xf]
        %v301 = vld [vmem:[%s296 + $0x10] sm:$0xf]
        %v302 = vld [vmem:[%s296 + $0x14] sm:$0xf]
        %v303 = vld [vmem:[%s296 + $0x18] sm:$0xf]
        %v304 = vld [vmem:[%s296 + $0x1c] sm:$0xf]
        %v305 = vld [vmem:[%s296 + $0x20] sm:$0xf]
        %v306 = vld [vmem:[%s296 + $0x24] sm:$0xf]
        %v307 = vld [vmem:[%s296 + $0x28] sm:$0xf]
        %v308 = vld [vmem:[%s296 + $0x2c] sm:$0xf]
        %v309 = vld [vmem:[%s296 + $0x30] sm:$0xf]
        %v310 = vld [vmem:[%s296 + $0x34] sm:$0xf]
        %v311 = vld [vmem:[%s296 + $0x38] sm:$0xf]
        %v312 = vld [vmem:[%s296 + $0x3c] sm:$0xf]
        %v329 = vunpack.c.l.b16 %v297
        %v330 = vunpack.c.l.b16 %v298
        %v331 = vunpack.c.l.b16 %v299
        %v332 = vunpack.c.l.b16 %v300
        %v333 = vunpack.c.l.b16 %v301
        %v334 = vunpack.c.l.b16 %v302
        %v335 = vunpack.c.l.b16 %v303
        %v336 = vunpack.c.l.b16 %v304
        %v337 = vunpack.c.l.b16 %v305
        %v338 = vunpack.c.l.b16 %v306
        %v339 = vunpack.c.l.b16 %v307
        %v340 = vunpack.c.l.b16 %v308
        %v341 = vunpack.c.l.b16 %v309
        %v342 = vunpack.c.l.b16 %v310
        %v343 = vunpack.c.l.b16 %v311
        %v344 = vunpack.c.l.b16 %v312
        %v345 = vpack.c.b16 %v330, %v329
        %v346 = vpack.c.b16 %v332, %v331
        %v347 = vpack.c.b16 %v334, %v333
        %v348 = vpack.c.b16 %v336, %v335
        %v349 = vpack.c.b16 %v338, %v337
        %v350 = vpack.c.b16 %v340, %v339
        %v351 = vpack.c.b16 %v342, %v341
        %v352 = vpack.c.b16 %v344, %v343
        %361 = vmatprep.subr.bf16.mxu0 0
        %362 = vmatpush1.bf16.msra.mxu0 %v345
        %363 = vmatprep.subr.bf16.mxu0 0
        %364 = vmatpush1.bf16.msra.mxu0 %v346
        %365 = vmatprep.subr.bf16.mxu0 0
        %366 = vmatpush1.bf16.msra.mxu0 %v347
        %367 = vmatprep.subr.bf16.mxu0 0
        %368 = vmatpush1.bf16.msra.mxu0 %v348
        %369 = vmatprep.subr.bf16.mxu0 0
        %370 = vmatpush1.bf16.msra.mxu0 %v349
        %371 = vmatprep.subr.bf16.mxu0 0
        %372 = vmatpush1.bf16.msra.mxu0 %v350
        %373 = vmatprep.subr.bf16.mxu0 0
        %374 = vmatpush1.bf16.msra.mxu0 %v351
        %375 = vmatprep.subr.bf16.mxu0 0
        %376 = vmatpush1.bf16.msra.mxu0 %v352
        %377 = vmatprep.subr.bf16.mxu0 0
        %378 = vmatpush1.bf16.msra.mxu0 0
        %379 = vmatprep.subr.bf16.mxu0 0
        %380 = vmatpush1.bf16.msra.mxu0 0
        %381 = vmatprep.subr.bf16.mxu0 0
        %382 = vmatpush1.bf16.msra.mxu0 0
        %383 = vmatprep.subr.bf16.mxu0 0
        %384 = vmatpush1.bf16.msra.mxu0 0
        %385 = vmatprep.subr.bf16.mxu0 0
        %386 = vmatpush1.bf16.msra.mxu0 0
        %387 = vmatprep.subr.bf16.mxu0 0
        %388 = vmatpush1.bf16.msra.mxu0 0
        %389 = vmatprep.subr.bf16.mxu0 0
        %390 = vmatpush1.bf16.msra.mxu0 0
        %391 = vmatprep.subr.bf16.mxu0 0
        %392 = vmatpush1.bf16.msra.mxu0 0
        %393 = vmatprep.mubr.bf16.mxu0 0
        %394 = vmatmul.mubr.bf16.gmra.mrb[0].mxu0 %v295
        %v395 = vpop.f32.mrb[0].mxu0
        %v396 = vadd.f32 0.0, %v395
        %v397 = vpop.f32.mrb[0].mxu0
        %v398 = vpop.f32.mrb[0].mxu0
        %v399 = vadd.f32 0.0, %v398
        %v400 = vpop.f32.mrb[0].mxu0
        %401 = vdwg.mxu0
        %v402 = vmax.f32 %v396, 0.0
        %v403 = vmax.f32 %v399, 0.0
        %v404 = vpack.c.bf16 %v403, %v402
        %s405 = scalar_lea.vmem [#allocation5], 128
        %v406 = vld [vmem:[%s405] sm:$0xf]
        %v407 = vld [vmem:[%s405 + $0x4] sm:$0xf]
        %v408 = vld [vmem:[%s405 + $0x8] sm:$0xf]
        %v409 = vld [vmem:[%s405 + $0xc] sm:$0xf]
        %v410 = vld [vmem:[%s405 + $0x10] sm:$0xf]
        %v411 = vld [vmem:[%s405 + $0x14] sm:$0xf]
        %v412 = vld [vmem:[%s405 + $0x18] sm:$0xf]
        %v413 = vld [vmem:[%s405 + $0x1c] sm:$0xf]
        %v414 = vld [vmem:[%s405 + $0x20] sm:$0xf]
        %v415 = vld [vmem:[%s405 + $0x24] sm:$0xf]
        %v416 = vld [vmem:[%s405 + $0x28] sm:$0xf]
        %v417 = vld [vmem:[%s405 + $0x2c] sm:$0xf]
        %v418 = vld [vmem:[%s405 + $0x30] sm:$0xf]
        %v419 = vld [vmem:[%s405 + $0x34] sm:$0xf]
        %v420 = vld [vmem:[%s405 + $0x38] sm:$0xf]
        %v421 = vld [vmem:[%s405 + $0x3c] sm:$0xf]
        %v438 = vunpack.c.l.b16 %v406
        %v439 = vunpack.c.l.b16 %v407
        %v440 = vunpack.c.l.b16 %v408
        %v441 = vunpack.c.l.b16 %v409
        %v442 = vunpack.c.l.b16 %v410
        %v443 = vunpack.c.l.b16 %v411
        %v444 = vunpack.c.l.b16 %v412
        %v445 = vunpack.c.l.b16 %v413
        %v446 = vunpack.c.l.b16 %v414
        %v447 = vunpack.c.l.b16 %v415
        %v448 = vunpack.c.l.b16 %v416
        %v449 = vunpack.c.l.b16 %v417
        %v450 = vunpack.c.l.b16 %v418
        %v451 = vunpack.c.l.b16 %v419
        %v452 = vunpack.c.l.b16 %v420
        %v453 = vunpack.c.l.b16 %v421
        %v454 = vpack.c.b16 %v439, %v438
        %v455 = vpack.c.b16 %v441, %v440
        %v456 = vpack.c.b16 %v443, %v442
        %v457 = vpack.c.b16 %v445, %v444
        %v458 = vpack.c.b16 %v447, %v446
        %v459 = vpack.c.b16 %v449, %v448
        %v460 = vpack.c.b16 %v451, %v450
        %v461 = vpack.c.b16 %v453, %v452
        %470 = vmatprep.subr.bf16.mxu0 0
        %471 = vmatpush1.bf16.msra.mxu0 %v454
        %472 = vmatprep.subr.bf16.mxu0 0
        %473 = vmatpush1.bf16.msra.mxu0 %v455
        %474 = vmatprep.subr.bf16.mxu0 0
        %475 = vmatpush1.bf16.msra.mxu0 %v456
        %476 = vmatprep.subr.bf16.mxu0 0
        %477 = vmatpush1.bf16.msra.mxu0 %v457
        %478 = vmatprep.subr.bf16.mxu0 0
        %479 = vmatpush1.bf16.msra.mxu0 %v458
        %480 = vmatprep.subr.bf16.mxu0 0
        %481 = vmatpush1.bf16.msra.mxu0 %v459
        %482 = vmatprep.subr.bf16.mxu0 0
        %483 = vmatpush1.bf16.msra.mxu0 %v460
        %484 = vmatprep.subr.bf16.mxu0 0
        %485 = vmatpush1.bf16.msra.mxu0 %v461
        %486 = vmatprep.subr.bf16.mxu0 0
        %487 = vmatpush1.bf16.msra.mxu0 0
        %488 = vmatprep.subr.bf16.mxu0 0
        %489 = vmatpush1.bf16.msra.mxu0 0
        %490 = vmatprep.subr.bf16.mxu0 0
        %491 = vmatpush1.bf16.msra.mxu0 0
        %492 = vmatprep.subr.bf16.mxu0 0
        %493 = vmatpush1.bf16.msra.mxu0 0
        %494 = vmatprep.subr.bf16.mxu0 0
        %495 = vmatpush1.bf16.msra.mxu0 0
        %496 = vmatprep.subr.bf16.mxu0 0
        %497 = vmatpush1.bf16.msra.mxu0 0
        %498 = vmatprep.subr.bf16.mxu0 0
        %499 = vmatpush1.bf16.msra.mxu0 0
        %500 = vmatprep.subr.bf16.mxu0 0
        %501 = vmatpush1.bf16.msra.mxu0 0
        %502 = vmatprep.mubr.bf16.mxu0 0
        %503 = vmatmul.mubr.bf16.gmra.mrb[0].mxu0 %v404
        %v504 = vpop.f32.mrb[0].mxu0
        %v505 = vadd.f32 0.0, %v504
        %v506 = vpop.f32.mrb[0].mxu0
        %v507 = vpop.f32.mrb[0].mxu0
        %v508 = vadd.f32 0.0, %v507
        %v509 = vpop.f32.mrb[0].mxu0
        %510 = vdwg.mxu0
        %v511 = vmax.f32 %v505, 0.0
        %v512 = vmax.f32 %v508, 0.0
        %v513 = vpack.c.bf16 %v512, %v511
        %s514 = scalar_lea.vmem [#allocation5], 192
        %v515 = vld [vmem:[%s514] sm:$0xf]
        %v516 = vld [vmem:[%s514 + $0x4] sm:$0xf]
        %v517 = vld [vmem:[%s514 + $0x8] sm:$0xf]
        %v518 = vld [vmem:[%s514 + $0xc] sm:$0xf]
        %v519 = vld [vmem:[%s514 + $0x10] sm:$0xf]
        %v520 = vld [vmem:[%s514 + $0x14] sm:$0xf]
        %v521 = vld [vmem:[%s514 + $0x18] sm:$0xf]
        %v522 = vld [vmem:[%s514 + $0x1c] sm:$0xf]
        %v523 = vld [vmem:[%s514 + $0x20] sm:$0xf]
        %v524 = vld [vmem:[%s514 + $0x24] sm:$0xf]
        %v525 = vld [vmem:[%s514 + $0x28] sm:$0xf]
        %v526 = vld [vmem:[%s514 + $0x2c] sm:$0xf]
        %v527 = vld [vmem:[%s514 + $0x30] sm:$0xf]
        %v528 = vld [vmem:[%s514 + $0x34] sm:$0xf]
        %v529 = vld [vmem:[%s514 + $0x38] sm:$0xf]
        %v530 = vld [vmem:[%s514 + $0x3c] sm:$0xf]
        %v547 = vunpack.c.l.b16 %v515
        %v548 = vunpack.c.l.b16 %v516
        %v549 = vunpack.c.l.b16 %v517
        %v550 = vunpack.c.l.b16 %v518
        %v551 = vunpack.c.l.b16 %v519
        %v552 = vunpack.c.l.b16 %v520
        %v553 = vunpack.c.l.b16 %v521
        %v554 = vunpack.c.l.b16 %v522
        %v555 = vunpack.c.l.b16 %v523
        %v556 = vunpack.c.l.b16 %v524
        %v557 = vunpack.c.l.b16 %v525
        %v558 = vunpack.c.l.b16 %v526
        %v559 = vunpack.c.l.b16 %v527
        %v560 = vunpack.c.l.b16 %v528
        %v561 = vunpack.c.l.b16 %v529
        %v562 = vunpack.c.l.b16 %v530
        %v563 = vpack.c.b16 %v548, %v547
        %v564 = vpack.c.b16 %v550, %v549
        %v565 = vpack.c.b16 %v552, %v551
        %v566 = vpack.c.b16 %v554, %v553
        %v567 = vpack.c.b16 %v556, %v555
        %v568 = vpack.c.b16 %v558, %v557
        %v569 = vpack.c.b16 %v560, %v559
        %v570 = vpack.c.b16 %v562, %v561
        %579 = vmatprep.subr.bf16.mxu0 0
        %580 = vmatpush1.bf16.msra.mxu0 %v563
        %581 = vmatprep.subr.bf16.mxu0 0
        %582 = vmatpush1.bf16.msra.mxu0 %v564
        %583 = vmatprep.subr.bf16.mxu0 0
        %584 = vmatpush1.bf16.msra.mxu0 %v565
        %585 = vmatprep.subr.bf16.mxu0 0
        %586 = vmatpush1.bf16.msra.mxu0 %v566
        %587 = vmatprep.subr.bf16.mxu0 0
        %588 = vmatpush1.bf16.msra.mxu0 %v567
        %589 = vmatprep.subr.bf16.mxu0 0
        %590 = vmatpush1.bf16.msra.mxu0 %v568
        %591 = vmatprep.subr.bf16.mxu0 0
        %592 = vmatpush1.bf16.msra.mxu0 %v569
        %593 = vmatprep.subr.bf16.mxu0 0
        %594 = vmatpush1.bf16.msra.mxu0 %v570
        %595 = vmatprep.subr.bf16.mxu0 0
        %596 = vmatpush1.bf16.msra.mxu0 0
        %597 = vmatprep.subr.bf16.mxu0 0
        %598 = vmatpush1.bf16.msra.mxu0 0
        %599 = vmatprep.subr.bf16.mxu0 0
        %600 = vmatpush1.bf16.msra.mxu0 0
        %601 = vmatprep.subr.bf16.mxu0 0
        %602 = vmatpush1.bf16.msra.mxu0 0
        %603 = vmatprep.subr.bf16.mxu0 0
        %604 = vmatpush1.bf16.msra.mxu0 0
        %605 = vmatprep.subr.bf16.mxu0 0
        %606 = vmatpush1.bf16.msra.mxu0 0
        %607 = vmatprep.subr.bf16.mxu0 0
        %608 = vmatpush1.bf16.msra.mxu0 0
        %609 = vmatprep.subr.bf16.mxu0 0
        %610 = vmatpush1.bf16.msra.mxu0 0
        %611 = vmatprep.mubr.bf16.mxu0 0
        %612 = vmatmul.mubr.bf16.gmra.mrb[0].mxu0 %v513
        %v613 = vpop.f32.mrb[0].mxu0
        %v614 = vadd.f32 0.0, %v613
        %v615 = vpop.f32.mrb[0].mxu0
        %v616 = vpop.f32.mrb[0].mxu0
        %v617 = vadd.f32 0.0, %v616
        %v618 = vpop.f32.mrb[0].mxu0
        %619 = vdwg.mxu0
        %v620 = vmax.f32 %v614, 0.0
        %v621 = vmax.f32 %v617, 0.0
        %v622 = vpack.c.bf16 %v621, %v620
        %s623 = scalar_lea.vmem [#allocation5], 256
        %v624 = vld [vmem:[%s623] sm:$0xf]
        %v625 = vld [vmem:[%s623 + $0x4] sm:$0xf]
        %v626 = vld [vmem:[%s623 + $0x8] sm:$0xf]
        %v627 = vld [vmem:[%s623 + $0xc] sm:$0xf]
        %v628 = vld [vmem:[%s623 + $0x10] sm:$0xf]
        %v629 = vld [vmem:[%s623 + $0x14] sm:$0xf]
        %v630 = vld [vmem:[%s623 + $0x18] sm:$0xf]
        %v631 = vld [vmem:[%s623 + $0x1c] sm:$0xf]
        %v632 = vld [vmem:[%s623 + $0x20] sm:$0xf]
        %v633 = vld [vmem:[%s623 + $0x24] sm:$0xf]
        %v634 = vld [vmem:[%s623 + $0x28] sm:$0xf]
        %v635 = vld [vmem:[%s623 + $0x2c] sm:$0xf]
        %v636 = vld [vmem:[%s623 + $0x30] sm:$0xf]
        %v637 = vld [vmem:[%s623 + $0x34] sm:$0xf]
        %v638 = vld [vmem:[%s623 + $0x38] sm:$0xf]
        %v639 = vld [vmem:[%s623 + $0x3c] sm:$0xf]
        %v656 = vunpack.c.l.b16 %v624
        %v657 = vunpack.c.l.b16 %v625
        %v658 = vunpack.c.l.b16 %v626
        %v659 = vunpack.c.l.b16 %v627
        %v660 = vunpack.c.l.b16 %v628
        %v661 = vunpack.c.l.b16 %v629
        %v662 = vunpack.c.l.b16 %v630
        %v663 = vunpack.c.l.b16 %v631
        %v664 = vunpack.c.l.b16 %v632
        %v665 = vunpack.c.l.b16 %v633
        %v666 = vunpack.c.l.b16 %v634
        %v667 = vunpack.c.l.b16 %v635
        %v668 = vunpack.c.l.b16 %v636
        %v669 = vunpack.c.l.b16 %v637
        %v670 = vunpack.c.l.b16 %v638
        %v671 = vunpack.c.l.b16 %v639
        %v672 = vpack.c.b16 %v657, %v656
        %v673 = vpack.c.b16 %v659, %v658
        %v674 = vpack.c.b16 %v661, %v660
        %v675 = vpack.c.b16 %v663, %v662
        %v676 = vpack.c.b16 %v665, %v664
        %v677 = vpack.c.b16 %v667, %v666
        %v678 = vpack.c.b16 %v669, %v668
        %v679 = vpack.c.b16 %v671, %v670
        %688 = vmatprep.subr.bf16.mxu0 0
        %689 = vmatpush1.bf16.msra.mxu0 %v672
        %690 = vmatprep.subr.bf16.mxu0 0
        %691 = vmatpush1.bf16.msra.mxu0 %v673
        %692 = vmatprep.subr.bf16.mxu0 0
        %693 = vmatpush1.bf16.msra.mxu0 %v674
        %694 = vmatprep.subr.bf16.mxu0 0
        %695 = vmatpush1.bf16.msra.mxu0 %v675
        %696 = vmatprep.subr.bf16.mxu0 0
        %697 = vmatpush1.bf16.msra.mxu0 %v676
        %698 = vmatprep.subr.bf16.mxu0 0
        %699 = vmatpush1.bf16.msra.mxu0 %v677
        %700 = vmatprep.subr.bf16.mxu0 0
        %701 = vmatpush1.bf16.msra.mxu0 %v678
        %702 = vmatprep.subr.bf16.mxu0 0
        %703 = vmatpush1.bf16.msra.mxu0 %v679
        %704 = vmatprep.subr.bf16.mxu0 0
        %705 = vmatpush1.bf16.msra.mxu0 0
        %706 = vmatprep.subr.bf16.mxu0 0
        %707 = vmatpush1.bf16.msra.mxu0 0
        %708 = vmatprep.subr.bf16.mxu0 0
        %709 = vmatpush1.bf16.msra.mxu0 0
        %710 = vmatprep.subr.bf16.mxu0 0
        %711 = vmatpush1.bf16.msra.mxu0 0
        %712 = vmatprep.subr.bf16.mxu0 0
        %713 = vmatpush1.bf16.msra.mxu0 0
        %714 = vmatprep.subr.bf16.mxu0 0
        %715 = vmatpush1.bf16.msra.mxu0 0
        %716 = vmatprep.subr.bf16.mxu0 0
        %717 = vmatpush1.bf16.msra.mxu0 0
        %718 = vmatprep.subr.bf16.mxu0 0
        %719 = vmatpush1.bf16.msra.mxu0 0
        %720 = vmatprep.mubr.bf16.mxu0 0
        %721 = vmatmul.mubr.bf16.gmra.mrb[0].mxu0 %v622
        %v722 = vpop.f32.mrb[0].mxu0
        %v723 = vadd.f32 0.0, %v722
        %v724 = vpop.f32.mrb[0].mxu0
        %v725 = vpop.f32.mrb[0].mxu0
        %v726 = vadd.f32 0.0, %v725
        %v727 = vpop.f32.mrb[0].mxu0
        %728 = vdwg.mxu0
        %v729 = vmax.f32 %v723, 0.0
        %v730 = vmax.f32 %v726, 0.0
        %v731 = vpack.c.bf16 %v730, %v729
        %v733 = vunpack.c.l.b16 %v731
        %v734 = vunpack.c.h.b16 %v731
        %v735 = vpack.c.b16 %v733, %v733
        %v736 = vpack.c.b16 %v734, %v734
        %739 = vst [vmem:[%s176] sm:$0xf] %v735
        %740 = vst [vmem:[%s176 + $0x4] sm:$0xf] %v736
        %s741 = sand.u32 %s75, 1
        %s742 = scalar_lea.sflag [#allocation4], %s741
        %s743 = sand.u32 %s75, 1
        %s744 = smul.addr %s743, 8
        %s745 = scalar_lea.vmem [#allocation7], %s744
        // Predicated region
        $region37: #{tpu_custom_call.1} parent=27 // pred_check
          %p746 = pneg %p85
        $region38: #{tpu_custom_call.1} parent=27 // pred_check_branch
          %748 = sbr.rel (%p746) target = $region40
        $region39: #{tpu_custom_call.1} parent=27 // pred_region
          %s749 = smul.u32 2, %s20
          %s751 = ssub.s32 128, 128
          %752 = vsyncadd %s742, %s751
          %s753 = smul.addr %s749, 64
          %s754 = scalar_lea.hbm %s2, %s753
          %s755 = sshll.u32 %s745, 4
          %s756 = int_to_ptr.vmem [resolvable:$true] %s755
          %761 = dma.vmem_to_hbm [thread:$0]  %s756, 128, %s754, %s742, 64, 64, 4
        $region40: #{tpu_custom_call.1} parent=27 // pred_fallthru
          _
      $region28: #{tpu_custom_call.1} parent=5 // pred_fallthru
        _
      %p762 = scmp.le.s32.totalorder 2, %s15
      // Predicated region
      $region41: #{tpu_custom_call.1} parent=5 // pred_check
        %p763 = pneg %p762
      $region42: #{tpu_custom_call.1} parent=5 // pred_check_branch
        %765 = sbr.rel (%p763) target = $region44
      $region43: #{tpu_custom_call.1} parent=5 // pred_region
        %s766 = ssub.s32 %s15, 2
        // Predicated region
        $region45: #{tpu_custom_call.1} parent=43 // pred_check
          %p767 = pneg %p91
        $region46: #{tpu_custom_call.1} parent=43 // pred_check_branch
          %769 = sbr.rel (%p767) target = $region48
        $region47: #{tpu_custom_call.1} parent=43 // pred_region
          %s770 = sand.u32 %s76, 1
          %s771 = scalar_lea.sflag [#allocation4], %s770
          %s772 = sand.u32 %s76, 1
          %s773 = smul.addr %s772, 8
          %s774 = scalar_lea.vmem [#allocation7], %s773
          %775 = dma.done %s771, 128
        $region48: #{tpu_custom_call.1} parent=43 // pred_fallthru
          _
      $region44: #{tpu_custom_call.1} parent=5 // pred_fallthru
        _
    $region6: #{tpu_custom_call.1} parent=1 // loop_footer
      %s19 = sadd.s32 1, %s15
    $region7: #{tpu_custom_call.1} parent=1 // loop_footer_branch
      %14 = sbr.rel target = $region3
    $region8: #{tpu_custom_call.1} parent=1 // loop_exit
      _
    %776 = vsyncpa [#allocation3], 1
    %s777 = scalar_lea.sflag [#allocation3], 1
    %778 = vsyncpa %s777, 1
    %779 = vsyncpa [#allocation6], 1
    %780 = vsyncpa [#allocation4], 1
    %s781 = scalar_lea.sflag [#allocation4], 1
    %782 = vsyncpa %s781, 1

</llo_original>
